<compile_context>
chip_gen: v7x
topology: tpu7x:2x2x1
jax: 0.10.0
libtpu: 0.0.40
codegen_flags: <defaults>
</compile_context>

<pallas_src>
import functools

import jax
import jax.numpy as jnp
from jax.experimental import pallas as pl
from jax.experimental.pallas import tpu as pltpu

HIDDEN = 64     # logical hidden width of the Encoder
LANES = 128     # lane-dense (padded) hidden width used inside the kernel


def _encoder_kernel(x_ref, w1_ref, w2_ref, w3_ref, b_ref, o_ref):
    cdt = w1_ref.dtype
    b = b_ref[...]  # (8, 128) f32; rows 0..2 are b1/b2/b3 (lane-padded)

    # Stage 1: Linear(in_feature -> 128-padded) + ReLU (f32 accumulate/epilogue)
    h = jnp.dot(x_ref[...], w1_ref[...], preferred_element_type=jnp.float32)
    h = jnp.maximum(h + b[0:1, :], 0.0)
    # Stage 2
    h = jnp.dot(h.astype(cdt), w2_ref[...], preferred_element_type=jnp.float32)
    h = jnp.maximum(h + b[1:2, :], 0.0)
    # Stage 3
    h = jnp.dot(h.astype(cdt), w3_ref[...], preferred_element_type=jnp.float32)
    h = jnp.maximum(h + b[2:3, :], 0.0)

    o_ref[...] = h.astype(o_ref.dtype)


@functools.partial(jax.jit, static_argnames=("block_m", "compute_dtype"))
def encoder_forward(x, params, block_m=1024, compute_dtype=jnp.bfloat16):
    """x: [B, in_feature] float32.  params: padded/transposed weights + biases."""
    B, F = x.shape

    w1 = params["w1"].astype(compute_dtype)   # [F,   128]
    w2 = params["w2"].astype(compute_dtype)   # [128, 128]
    w3 = params["w3"].astype(compute_dtype)   # [128, 128]
    b = params["b"]                            # [8,   128] float32

    xc = x.astype(compute_dtype)

    # Row tile: multiple of 8, capped at block_m; pad batch so the tile divides it.
    tm = min(block_m, 8 * pl.cdiv(B, 8))
    pad = (-B) % tm
    if pad:
        xc = jnp.pad(xc, ((0, pad), (0, 0)))
    Bp = xc.shape[0]

    out = pl.pallas_call(
        _encoder_kernel,
        out_shape=jax.ShapeDtypeStruct((Bp, LANES), jnp.float32),
        grid_spec=pltpu.PrefetchScalarGridSpec(
            num_scalar_prefetch=0,
            grid=(Bp // tm,),
            in_specs=[
                pl.BlockSpec((tm, F), lambda i: (i, 0)),           # x tile
                pl.BlockSpec((F, LANES), lambda i: (0, 0)),        # w1 (resident)
                pl.BlockSpec((LANES, LANES), lambda i: (0, 0)),    # w2 (resident)
                pl.BlockSpec((LANES, LANES), lambda i: (0, 0)),    # w3 (resident)
                pl.BlockSpec((8, LANES), lambda i: (0, 0)),        # packed biases
            ],
            out_specs=pl.BlockSpec((tm, LANES), lambda i: (i, 0)),
        ),
        compiler_params=pltpu.CompilerParams(
            dimension_semantics=("parallel",)
        ),
    )(xc, w1, w2, w3, b)

    # Drop padded batch rows and padded lanes.
    return out[:B, :HIDDEN]


def init_encoder_params(key, in_feature):
    """Deterministic init mirroring nn.Linear's U(-1/sqrt(fan_in), +) default,
    stored transposed ([in, out]) and zero-padded to 128 lanes for the kernel."""
    ks = jax.random.split(key, 6)

    def linear(kw, kb, fan_in, fan_out):
        bound = 1.0 / jnp.sqrt(fan_in)
        w = jax.random.uniform(kw, (fan_in, fan_out), jnp.float32, -bound, bound)
        b = jax.random.uniform(kb, (fan_out,), jnp.float32, -bound, bound)
        return w, b

    w1, b1 = linear(ks[0], ks[1], in_feature, HIDDEN)   # [F, 64]
    w2, b2 = linear(ks[2], ks[3], HIDDEN, HIDDEN)       # [64, 64]
    w3, b3 = linear(ks[4], ks[5], HIDDEN, HIDDEN)       # [64, 64]

    pad_n = LANES - HIDDEN
    # Pad output columns to 128; pad w2/w3 input rows to 128 (extra rows are
    # multiplied by zero-valued padded activations -> exact same math).
    w1p = jnp.pad(w1, ((0, 0), (0, pad_n)))                      # [F, 128]
    w2p = jnp.pad(w2, ((0, pad_n), (0, pad_n)))                  # [128, 128]
    w3p = jnp.pad(w3, ((0, pad_n), (0, pad_n)))                  # [128, 128]

    # One lane-dense (8, 128) f32 bias buffer: rows 0..2 = b1/b2/b3, rest zero.
    bias = jnp.zeros((8, LANES), jnp.float32)
    bias = bias.at[0, :HIDDEN].set(b1)
    bias = bias.at[1, :HIDDEN].set(b2)
    bias = bias.at[2, :HIDDEN].set(b3)

    return {"w1": w1p, "w2": w2p, "w3": w3p, "b": bias}


def encoder_reference(x, p):
    """Pure-JAX f32 reference (matches the PyTorch Encoder forward)."""
    h = jnp.maximum(x @ p["w1"] + p["b"][0:1, :], 0.0)
    h = jnp.maximum(h @ p["w2"] + p["b"][1:2, :], 0.0)
    h = jnp.maximum(h @ p["w3"] + p["b"][2:3, :], 0.0)
    return h[:, :HIDDEN]


if __name__ == "__main__":
    key = jax.random.PRNGKey(0)
    k_x, k_p = jax.random.split(key)

    batch, in_feature = 8, 32  # config['in_feature'] = 32
    x = jax.random.normal(k_x, (batch, in_feature), jnp.float32)
    params = init_encoder_params(k_p, in_feature)

    ref = encoder_reference(x, params)

    # Exact-parity path (f32 matmul operands).
    out_f32 = jax.block_until_ready(
        encoder_forward(x, params, compute_dtype=jnp.float32))
    assert out_f32.shape == (batch, HIDDEN), out_f32.shape
    assert jnp.allclose(out_f32, ref, atol=1e-5, rtol=1e-5), "f32 mismatch vs reference"

    # Fast path (bf16 matmul operands, f32 accumulate / bias / ReLU).
    out_bf16 = jax.block_until_ready(encoder_forward(x, params))
    assert out_bf16.shape == (batch, HIDDEN), out_bf16.shape
    assert jnp.allclose(out_bf16, ref, atol=5e-2, rtol=5e-2), "bf16 mismatch vs reference"

    print("KERNEL_OK")
</pallas_src>

<mosaic_0001>
module attributes {stable_mosaic.version = 11 : i64} {
  func.func @_encoder_kernel(%arg0: i32, %arg1: memref<8x32xf32, #tpu.memory_space<vmem>>, %arg2: memref<32x128xf32, #tpu.memory_space<vmem>>, %arg3: memref<128x128xf32, #tpu.memory_space<vmem>>, %arg4: memref<128x128xf32, #tpu.memory_space<vmem>>, %arg5: memref<8x128xf32, #tpu.memory_space<vmem>>, %arg6: memref<8x128xf32, #tpu.memory_space<vmem>>) attributes {dimension_semantics = [#tpu.dimension_semantics<parallel>], iteration_bounds = array<i64: 1>, scalar_prefetch = 0 : i64, scratch_operands = 0 : i64, tpu.core_type = #tpu.core_type<tc>, window_params = [{transform_indices = @transform_0, window_bounds = array<i64: 8, 32>}, {pipeline_mode = #tpu.pipeline_mode<synchronous>, transform_indices = @transform_1, window_bounds = array<i64: 32, 128>}, {pipeline_mode = #tpu.pipeline_mode<synchronous>, transform_indices = @transform_2, window_bounds = array<i64: 128, 128>}, {pipeline_mode = #tpu.pipeline_mode<synchronous>, transform_indices = @transform_3, window_bounds = array<i64: 128, 128>}, {pipeline_mode = #tpu.pipeline_mode<synchronous>, transform_indices = @transform_4, window_bounds = array<i64: 8, 128>}, {transform_indices = @transform_5, window_bounds = array<i64: 8, 128>}]} {
    %c0 = arith.constant 0 : index
    %c0_0 = arith.constant 0 : index
    %0 = vector.load %arg5[%c0, %c0_0] : memref<8x128xf32, #tpu.memory_space<vmem>>, vector<8x128xf32>
    %c0_1 = arith.constant 0 : index
    %c0_2 = arith.constant 0 : index
    %1 = vector.load %arg1[%c0_1, %c0_2] : memref<8x32xf32, #tpu.memory_space<vmem>>, vector<8x32xf32>
    %c0_3 = arith.constant 0 : index
    %c0_4 = arith.constant 0 : index
    %2 = vector.load %arg2[%c0_3, %c0_4] : memref<32x128xf32, #tpu.memory_space<vmem>>, vector<32x128xf32>
    %cst = arith.constant dense<0.000000e+00> : vector<8x128xf32>
    %3 = tpu.matmul %1, %2, %cst {dimension_numbers = #tpu.dot_dimension_numbers<[1], [0], [0], [1], [0, 0, 1, 1], [], []>} : vector<8x32xf32>, vector<32x128xf32>, vector<8x128xf32> -> vector<8x128xf32>
    %4 = vector.extract_strided_slice %0 {offsets = [0, 0], sizes = [1, 128], strides = [1, 1]} : vector<8x128xf32> to vector<1x128xf32>
    %5 = vector.broadcast %4 : vector<1x128xf32> to vector<8x128xf32>
    %6 = arith.addf %3, %5 : vector<8x128xf32>
    %cst_5 = arith.constant 0.000000e+00 : f32
    %7 = vector.broadcast %cst_5 : f32 to vector<8x128xf32>
    %8 = arith.maximumf %6, %7 : vector<8x128xf32>
    %c0_6 = arith.constant 0 : index
    %c0_7 = arith.constant 0 : index
    %9 = vector.load %arg3[%c0_6, %c0_7] : memref<128x128xf32, #tpu.memory_space<vmem>>, vector<128x128xf32>
    %cst_8 = arith.constant dense<0.000000e+00> : vector<8x128xf32>
    %10 = tpu.matmul %8, %9, %cst_8 {dimension_numbers = #tpu.dot_dimension_numbers<[1], [0], [0], [1], [0, 0, 1, 1], [], []>} : vector<8x128xf32>, vector<128x128xf32>, vector<8x128xf32> -> vector<8x128xf32>
    %11 = vector.extract_strided_slice %0 {offsets = [1, 0], sizes = [1, 128], strides = [1, 1]} : vector<8x128xf32> to vector<1x128xf32>
    %12 = vector.broadcast %11 : vector<1x128xf32> to vector<8x128xf32>
    %13 = arith.addf %10, %12 : vector<8x128xf32>
    %cst_9 = arith.constant 0.000000e+00 : f32
    %14 = vector.broadcast %cst_9 : f32 to vector<8x128xf32>
    %15 = arith.maximumf %13, %14 : vector<8x128xf32>
    %c0_10 = arith.constant 0 : index
    %c0_11 = arith.constant 0 : index
    %16 = vector.load %arg4[%c0_10, %c0_11] : memref<128x128xf32, #tpu.memory_space<vmem>>, vector<128x128xf32>
    %cst_12 = arith.constant dense<0.000000e+00> : vector<8x128xf32>
    %17 = tpu.matmul %15, %16, %cst_12 {dimension_numbers = #tpu.dot_dimension_numbers<[1], [0], [0], [1], [0, 0, 1, 1], [], []>} : vector<8x128xf32>, vector<128x128xf32>, vector<8x128xf32> -> vector<8x128xf32>
    %18 = vector.extract_strided_slice %0 {offsets = [2, 0], sizes = [1, 128], strides = [1, 1]} : vector<8x128xf32> to vector<1x128xf32>
    %19 = vector.broadcast %18 : vector<1x128xf32> to vector<8x128xf32>
    %20 = arith.addf %17, %19 : vector<8x128xf32>
    %cst_13 = arith.constant 0.000000e+00 : f32
    %21 = vector.broadcast %cst_13 : f32 to vector<8x128xf32>
    %22 = arith.maximumf %20, %21 : vector<8x128xf32>
    %c0_14 = arith.constant 0 : index
    %c0_15 = arith.constant 0 : index
    %23 = vector.load %arg6[%c0_14, %c0_15] : memref<8x128xf32, #tpu.memory_space<vmem>>, vector<8x128xf32>
    tpu.vector_store %arg6[%c0_14, %c0_15], %22 {strides = array<i32>} : memref<8x128xf32, #tpu.memory_space<vmem>>, vector<8x128xf32>,
    return
  }
  func.func @transform_0(%arg0: i32) -> (i32, i32) {
    %c0_i32 = arith.constant 0 : i32
    %c0_i32_0 = arith.constant 0 : i32
    return %arg0, %c0_i32 : i32, i32
  }
  func.func @transform_1(%arg0: i32) -> (i32, i32) {
    %c0_i32 = arith.constant 0 : i32
    %c0_i32_0 = arith.constant 0 : i32
    %c0_i32_1 = arith.constant 0 : i32
    return %c0_i32, %c0_i32_0 : i32, i32
  }
  func.func @transform_2(%arg0: i32) -> (i32, i32) {
    %c0_i32 = arith.constant 0 : i32
    %c0_i32_0 = arith.constant 0 : i32
    %c0_i32_1 = arith.constant 0 : i32
    return %c0_i32, %c0_i32_0 : i32, i32
  }
  func.func @transform_3(%arg0: i32) -> (i32, i32) {
    %c0_i32 = arith.constant 0 : i32
    %c0_i32_0 = arith.constant 0 : i32
    %c0_i32_1 = arith.constant 0 : i32
    return %c0_i32, %c0_i32_0 : i32, i32
  }
  func.func @transform_4(%arg0: i32) -> (i32, i32) {
    %c0_i32 = arith.constant 0 : i32
    %c0_i32_0 = arith.constant 0 : i32
    %c0_i32_1 = arith.constant 0 : i32
    return %c0_i32, %c0_i32_0 : i32, i32
  }
  func.func @transform_5(%arg0: i32) -> (i32, i32) {
    %c0_i32 = arith.constant 0 : i32
    %c0_i32_0 = arith.constant 0 : i32
    return %arg0, %c0_i32 : i32, i32
  }
}

</mosaic_0001>

<llo_original>
// kernel: encoder_forward.1
$region0: #{encoder_forward.1}
  #allocation0 [shape = 'u32[]', space=smem, size = 0x4, offset = 0x4, fixed_abs, tag = 'smem constant byte address 0x4 - core index']
  #allocation1 [shape = 'u32[144,128]{1,0:T(1,128)}', space=vmem, size = 0x12000, scoped, tag = 'internal scratch']
  %s0 = inlined_call_operand.hbm [shape: f32[8,32], index: 0, kind: input, shape index: {}]
  %s1 = inlined_call_operand.hbm [shape: f32[32,128], index: 1, kind: input, shape index: {}]
  %s2 = inlined_call_operand.hbm [shape: f32[128,128], index: 2, kind: input, shape index: {}]
  %s3 = inlined_call_operand.hbm [shape: f32[128,128], index: 3, kind: input, shape index: {}]
  %s4 = inlined_call_operand.hbm [shape: f32[8,128], index: 4, kind: input, shape index: {}]
  %s5 = inlined_call_operand.hbm [shape: f32[8,128], index: 5, kind: output, shape index: {}]
  %s6 = sld [smem:[#allocation0]]
  $region50: #{encoder_forward.1} parent=0
    _
  %s8 = ssub.s32 1, %s6
  %s9 = scalar_select 0, %s8, %s6
  $region1: #{encoder_forward.1} parent=0
    #allocation2 [shape = 'u8[4096]{0}', space=vmem, size = 0x1000, scoped, tag = 'input window, operand 0, single buffered']
    #allocation3 [shape = 's32[1]{0}', space=sflag, size = 0x4, scoped, tag = 'scoped memory for encoder_forward.1']
    #allocation4 [shape = 's32[1]{0}', space=sflag, size = 0x4, scoped, tag = 'scoped memory for encoder_forward.1']
    #allocation5 [shape = 'u8[16384]{0}', space=vmem, size = 0x4000, scoped, tag = 'input window, operand 1, single buffered']
    #allocation6 [shape = 's32[1]{0}', space=sflag, size = 0x4, scoped, tag = 'scoped memory for encoder_forward.1']
    #allocation7 [shape = 'u8[65536]{0}', space=vmem, size = 0x10000, scoped, tag = 'input window, operand 2, single buffered']
    #allocation8 [shape = 'u8[65536]{0}', space=vmem, size = 0x10000, scoped, tag = 'input window, operand 3, single buffered']
    #allocation9 [shape = 's32[1]{0}', space=sflag, size = 0x4, scoped, tag = 'scoped memory for encoder_forward.1']
    #allocation10 [shape = 'u8[4096]{0}', space=vmem, size = 0x1000, scoped, tag = 'input window, operand 4, single buffered']
    #allocation11 [shape = 'u8[4096]{0}', space=vmem, size = 0x1000, scoped, tag = 'output window, operand 0, single buffered']
    %10 = vsyncpa [#allocation3], 0
    %11 = vsyncpa [#allocation6], 0
    %12 = vsyncpa [#allocation9], 0
    %13 = vsyncpa [#allocation4], 0
    // Predicated region
    $region2: #{encoder_forward.1} parent=1 // pred_check
      _
    $region3: #{encoder_forward.1} parent=1 // pred_check_branch
      %15 = sbr.rel (0) target = $region5
    $region4: #{encoder_forward.1} parent=1 // pred_region
      %s17 = ssub.s32 128, 128
      %18 = vsyncadd [#allocation3], %s17
      %s20 = sshll.u32 [#allocation2], 4
      %s21 = int_to_ptr.vmem [resolvable:$true] %s20
      %23 = dma.hbm_to_vmem [thread:$0]  %s0, 128, %s21, [#allocation3]
    $region5: #{encoder_forward.1} parent=1 // pred_fallthru
      _
    // Predicated region
    $region6: #{encoder_forward.1} parent=1 // pred_check
      _
    $region7: #{encoder_forward.1} parent=1 // pred_check_branch
      %25 = sbr.rel (0) target = $region9
    $region8: #{encoder_forward.1} parent=1 // pred_region
      %s27 = ssub.s32 512, 512
      %28 = vsyncadd [#allocation6], %s27
      %s29 = sshll.u32 [#allocation5], 4
      %s30 = int_to_ptr.vmem [resolvable:$true] %s29
      %35 = dma.hbm_to_vmem [thread:$0]  %s1, 512, %s30, [#allocation6], 128, 128, 8
    $region9: #{encoder_forward.1} parent=1 // pred_fallthru
      _
    // Predicated region
    $region10: #{encoder_forward.1} parent=1 // pred_check
      _
    $region11: #{encoder_forward.1} parent=1 // pred_check_branch
      %37 = sbr.rel (0) target = $region13
    $region12: #{encoder_forward.1} parent=1 // pred_region
      %s39 = ssub.s32 2048, 2048
      %40 = vsyncadd [#allocation6], %s39
      %s41 = sshll.u32 [#allocation7], 4
      %s42 = int_to_ptr.vmem [resolvable:$true] %s41
      %47 = dma.hbm_to_vmem [thread:$0]  %s2, 2048, %s42, [#allocation6], 128, 128, 8
    $region13: #{encoder_forward.1} parent=1 // pred_fallthru
      _
    // Predicated region
    $region14: #{encoder_forward.1} parent=1 // pred_check
      _
    $region15: #{encoder_forward.1} parent=1 // pred_check_branch
      %49 = sbr.rel (0) target = $region17
    $region16: #{encoder_forward.1} parent=1 // pred_region
      %s51 = ssub.s32 2048, 2048
      %52 = vsyncadd [#allocation9], %s51
      %s53 = sshll.u32 [#allocation8], 4
      %s54 = int_to_ptr.vmem [resolvable:$true] %s53
      %59 = dma.hbm_to_vmem [thread:$0]  %s3, 2048, %s54, [#allocation9], 128, 128, 8
    $region17: #{encoder_forward.1} parent=1 // pred_fallthru
      _
    // Predicated region
    $region18: #{encoder_forward.1} parent=1 // pred_check
      _
    $region19: #{encoder_forward.1} parent=1 // pred_check_branch
      %61 = sbr.rel (0) target = $region21
    $region20: #{encoder_forward.1} parent=1 // pred_region
      %s63 = ssub.s32 128, 128
      %64 = vsyncadd [#allocation9], %s63
      %s66 = sshll.u32 [#allocation10], 4
      %s67 = int_to_ptr.vmem [resolvable:$true] %s66
      %69 = dma.hbm_to_vmem [thread:$0]  %s4, 128, %s67, [#allocation9]
    $region21: #{encoder_forward.1} parent=1 // pred_fallthru
      _
    // Predicated region
    $region22: #{encoder_forward.1} parent=1 // pred_check
      _
    $region23: #{encoder_forward.1} parent=1 // pred_check_branch
      %71 = sbr.rel (0) target = $region25
    $region24: #{encoder_forward.1} parent=1 // pred_region
      %72 = dma.done [#allocation3], 128
    $region25: #{encoder_forward.1} parent=1 // pred_fallthru
      _
    // Predicated region
    $region26: #{encoder_forward.1} parent=1 // pred_check
      _
    $region27: #{encoder_forward.1} parent=1 // pred_check_branch
      %74 = sbr.rel (0) target = $region29
    $region28: #{encoder_forward.1} parent=1 // pred_region
      %75 = dma.done [#allocation6], 512
    $region29: #{encoder_forward.1} parent=1 // pred_fallthru
      _
    // Predicated region
    $region30: #{encoder_forward.1} parent=1 // pred_check
      _
    $region31: #{encoder_forward.1} parent=1 // pred_check_branch
      %77 = sbr.rel (0) target = $region33
    $region32: #{encoder_forward.1} parent=1 // pred_region
      %78 = dma.done [#allocation6], 2048
    $region33: #{encoder_forward.1} parent=1 // pred_fallthru
      _
    // Predicated region
    $region34: #{encoder_forward.1} parent=1 // pred_check
      _
    $region35: #{encoder_forward.1} parent=1 // pred_check_branch
      %80 = sbr.rel (0) target = $region37
    $region36: #{encoder_forward.1} parent=1 // pred_region
      %81 = dma.done [#allocation9], 2048
    $region37: #{encoder_forward.1} parent=1 // pred_fallthru
      _
    // Predicated region
    $region38: #{encoder_forward.1} parent=1 // pred_check
      _
    $region39: #{encoder_forward.1} parent=1 // pred_check_branch
      %83 = sbr.rel (0) target = $region41
    $region40: #{encoder_forward.1} parent=1 // pred_region
      %84 = dma.done [#allocation9], 128
    $region41: #{encoder_forward.1} parent=1 // pred_fallthru
      _
    %v85 = vld [vmem:[#allocation10] sm:$0xff]
    %v86 = vld [vmem:[#allocation2] sm:$0xff]
    %v87 = vld [vmem:[#allocation5] sm:$0xff]
    %v88 = vld [vmem:[#allocation5 + $0x8] sm:$0xff]
    %v89 = vld [vmem:[#allocation5 + $0x10] sm:$0xff]
    %v90 = vld [vmem:[#allocation5 + $0x18] sm:$0xff]
    %v91 = vlaneseq
    %v92 = vshrl.u32 %v91, 7
    %v93 = vsub.s32 0, %v92
    %v94 = vrot.slane %v85, %v93
    %vm95 = vcmask 261120
    %v97 = vsel %vm95, %v86, 0
    %99 = vmatprep.subr.mxu0 0.0
    %100 = vmatpush1.msra.mxu0 %v87
    %101 = vmatprep.subr.mxu0 0.0
    %102 = vmatpush1.msra.mxu0 %v88
    %103 = vmatprep.subr.mxu0 0.0
    %104 = vmatpush1.msra.mxu0 %v89
    %105 = vmatprep.subr.mxu0 0.0
    %106 = vmatpush1.msra.mxu0 %v90
    %107 = vmatprep.subr.mxu0 0.0
    %108 = vmatpush1.msra.mxu0 0.0
    %109 = vmatprep.subr.mxu0 0.0
    %110 = vmatpush1.msra.mxu0 0.0
    %111 = vmatprep.subr.mxu0 0.0
    %112 = vmatpush1.msra.mxu0 0.0
    %113 = vmatprep.subr.mxu0 0.0
    %114 = vmatpush1.msra.mxu0 0.0
    %115 = vmatprep.subr.mxu0 0.0
    %116 = vmatpush1.msra.mxu0 0.0
    %117 = vmatprep.subr.mxu0 0.0
    %118 = vmatpush1.msra.mxu0 0.0
    %119 = vmatprep.subr.mxu0 0.0
    %120 = vmatpush1.msra.mxu0 0.0
    %121 = vmatprep.subr.mxu0 0.0
    %122 = vmatpush1.msra.mxu0 0.0
    %123 = vmatprep.subr.mxu0 0.0
    %124 = vmatpush1.msra.mxu0 0.0
    %125 = vmatprep.subr.mxu0 0.0
    %126 = vmatpush1.msra.mxu0 0.0
    %127 = vmatprep.subr.mxu0 0.0
    %128 = vmatpush1.msra.mxu0 0.0
    %129 = vmatprep.subr.mxu0 0.0
    %130 = vmatpush1.msra.mxu0 0.0
    %131 = vmatprep.subr.mxu0 0.0
    %132 = vmatpush1.msra.mxu0 0.0
    %133 = vmatprep.subr.mxu0 0.0
    %134 = vmatpush1.msra.mxu0 0.0
    %135 = vmatprep.subr.mxu0 0.0
    %136 = vmatpush1.msra.mxu0 0.0
    %137 = vmatprep.subr.mxu0 0.0
    %138 = vmatpush1.msra.mxu0 0.0
    %139 = vmatprep.subr.mxu0 0.0
    %140 = vmatpush1.msra.mxu0 0.0
    %141 = vmatprep.subr.mxu0 0.0
    %142 = vmatpush1.msra.mxu0 0.0
    %143 = vmatprep.subr.mxu0 0.0
    %144 = vmatpush1.msra.mxu0 0.0
    %145 = vmatprep.subr.mxu0 0.0
    %146 = vmatpush1.msra.mxu0 0.0
    %147 = vmatprep.subr.mxu0 0.0
    %148 = vmatpush1.msra.mxu0 0.0
    %149 = vmatprep.subr.mxu0 0.0
    %150 = vmatpush1.msra.mxu0 0.0
    %151 = vmatprep.subr.mxu0 0.0
    %152 = vmatpush1.msra.mxu0 0.0
    %153 = vmatprep.subr.mxu0 0.0
    %154 = vmatpush1.msra.mxu0 0.0
    %155 = vmatprep.subr.mxu0 0.0
    %156 = vmatpush1.msra.mxu0 0.0
    %157 = vmatprep.subr.mxu0 0.0
    %158 = vmatpush1.msra.mxu0 0.0
    %159 = vmatprep.subr.mxu0 0.0
    %160 = vmatpush1.msra.mxu0 0.0
    %161 = vmatprep.subr.mxu0 0.0
    %162 = vmatpush1.msra.mxu0 0.0
    %163 = vmatprep.mubr.f32.mxu0 0.0
    %164 = vmatmul.mubr.f32.gmra.mrb[0].mxu0 %v97
    %v165 = vpop.f32.mrb[0].mxu0
    %v166 = vadd.f32 %v94, %v165
    %v167 = vpop.f32.mrb[0].mxu0
    %168 = vdwg.mxu0
    %v169 = vmax.f32 %v166, 0.0
    %v170 = vld [vmem:[#allocation7] sm:$0xff]
    %v171 = vld [vmem:[#allocation7 + $0x8] sm:$0xff]
    %v172 = vld [vmem:[#allocation7 + $0x10] sm:$0xff]
    %v173 = vld [vmem:[#allocation7 + $0x18] sm:$0xff]
    %v174 = vld [vmem:[#allocation7 + $0x20] sm:$0xff]
    %v175 = vld [vmem:[#allocation7 + $0x28] sm:$0xff]
    %v176 = vld [vmem:[#allocation7 + $0x30] sm:$0xff]
    %v177 = vld [vmem:[#allocation7 + $0x38] sm:$0xff]
    %v178 = vld [vmem:[#allocation7 + $0x40] sm:$0xff]
    %v179 = vld [vmem:[#allocation7 + $0x48] sm:$0xff]
    %v180 = vld [vmem:[#allocation7 + $0x50] sm:$0xff]
    %v181 = vld [vmem:[#allocation7 + $0x58] sm:$0xff]
    %v182 = vld [vmem:[#allocation7 + $0x60] sm:$0xff]
    %v183 = vld [vmem:[#allocation7 + $0x68] sm:$0xff]
    %v184 = vld [vmem:[#allocation7 + $0x70] sm:$0xff]
    %v185 = vld [vmem:[#allocation7 + $0x78] sm:$0xff]
    %v186 = vlaneseq
    %v187 = vshrl.u32 %v186, 7
    %v188 = vsub.s32 1, %v187
    %v189 = vrot.slane %v85, %v188
    %190 = vmatprep.subr.mxu0 0.0
    %191 = vmatpush1.msra.mxu0 %v170
    %192 = vmatprep.subr.mxu0 0.0
    %193 = vmatpush1.msra.mxu0 %v171
    %194 = vmatprep.subr.mxu0 0.0
    %195 = vmatpush1.msra.mxu0 %v172
    %196 = vmatprep.subr.mxu0 0.0
    %197 = vmatpush1.msra.mxu0 %v173
    %198 = vmatprep.subr.mxu0 0.0
    %199 = vmatpush1.msra.mxu0 %v174
    %200 = vmatprep.subr.mxu0 0.0
    %201 = vmatpush1.msra.mxu0 %v175
    %202 = vmatprep.subr.mxu0 0.0
    %203 = vmatpush1.msra.mxu0 %v176
    %204 = vmatprep.subr.mxu0 0.0
    %205 = vmatpush1.msra.mxu0 %v177
    %206 = vmatprep.subr.mxu0 0.0
    %207 = vmatpush1.msra.mxu0 %v178
    %208 = vmatprep.subr.mxu0 0.0
    %209 = vmatpush1.msra.mxu0 %v179
    %210 = vmatprep.subr.mxu0 0.0
    %211 = vmatpush1.msra.mxu0 %v180
    %212 = vmatprep.subr.mxu0 0.0
    %213 = vmatpush1.msra.mxu0 %v181
    %214 = vmatprep.subr.mxu0 0.0
    %215 = vmatpush1.msra.mxu0 %v182
    %216 = vmatprep.subr.mxu0 0.0
    %217 = vmatpush1.msra.mxu0 %v183
    %218 = vmatprep.subr.mxu0 0.0
    %219 = vmatpush1.msra.mxu0 %v184
    %220 = vmatprep.subr.mxu0 0.0
    %221 = vmatpush1.msra.mxu0 %v185
    %222 = vmatprep.subr.mxu0 0.0
    %223 = vmatpush1.msra.mxu0 0.0
    %224 = vmatprep.subr.mxu0 0.0
    %225 = vmatpush1.msra.mxu0 0.0
    %226 = vmatprep.subr.mxu0 0.0
    %227 = vmatpush1.msra.mxu0 0.0
    %228 = vmatprep.subr.mxu0 0.0
    %229 = vmatpush1.msra.mxu0 0.0
    %230 = vmatprep.subr.mxu0 0.0
    %231 = vmatpush1.msra.mxu0 0.0
    %232 = vmatprep.subr.mxu0 0.0
    %233 = vmatpush1.msra.mxu0 0.0
    %234 = vmatprep.subr.mxu0 0.0
    %235 = vmatpush1.msra.mxu0 0.0
    %236 = vmatprep.subr.mxu0 0.0
    %237 = vmatpush1.msra.mxu0 0.0
    %238 = vmatprep.subr.mxu0 0.0
    %239 = vmatpush1.msra.mxu0 0.0
    %240 = vmatprep.subr.mxu0 0.0
    %241 = vmatpush1.msra.mxu0 0.0
    %242 = vmatprep.subr.mxu0 0.0
    %243 = vmatpush1.msra.mxu0 0.0
    %244 = vmatprep.subr.mxu0 0.0
    %245 = vmatpush1.msra.mxu0 0.0
    %246 = vmatprep.subr.mxu0 0.0
    %247 = vmatpush1.msra.mxu0 0.0
    %248 = vmatprep.subr.mxu0 0.0
    %249 = vmatpush1.msra.mxu0 0.0
    %250 = vmatprep.subr.mxu0 0.0
    %251 = vmatpush1.msra.mxu0 0.0
    %252 = vmatprep.subr.mxu0 0.0
    %253 = vmatpush1.msra.mxu0 0.0
    %254 = vmatprep.mubr.f32.mxu0 0.0
    %255 = vmatmul.mubr.f32.gmra.mrb[0].mxu0 %v169
    %v256 = vpop.f32.mrb[0].mxu0
    %v257 = vadd.f32 %v189, %v256
    %v258 = vpop.f32.mrb[0].mxu0
    %259 = vdwg.mxu0
    %v260 = vmax.f32 %v257, 0.0
    %v261 = vld [vmem:[#allocation8] sm:$0xff]
    %v262 = vld [vmem:[#allocation8 + $0x8] sm:$0xff]
    %v263 = vld [vmem:[#allocation8 + $0x10] sm:$0xff]
    %v264 = vld [vmem:[#allocation8 + $0x18] sm:$0xff]
    %v265 = vld [vmem:[#allocation8 + $0x20] sm:$0xff]
    %v266 = vld [vmem:[#allocation8 + $0x28] sm:$0xff]
    %v267 = vld [vmem:[#allocation8 + $0x30] sm:$0xff]
    %v268 = vld [vmem:[#allocation8 + $0x38] sm:$0xff]
    %v269 = vld [vmem:[#allocation8 + $0x40] sm:$0xff]
    %v270 = vld [vmem:[#allocation8 + $0x48] sm:$0xff]
    %v271 = vld [vmem:[#allocation8 + $0x50] sm:$0xff]
    %v272 = vld [vmem:[#allocation8 + $0x58] sm:$0xff]
    %v273 = vld [vmem:[#allocation8 + $0x60] sm:$0xff]
    %v274 = vld [vmem:[#allocation8 + $0x68] sm:$0xff]
    %v275 = vld [vmem:[#allocation8 + $0x70] sm:$0xff]
    %v276 = vld [vmem:[#allocation8 + $0x78] sm:$0xff]
    %v277 = vlaneseq
    %v278 = vshrl.u32 %v277, 7
    %v279 = vsub.s32 2, %v278
    %v280 = vrot.slane %v85, %v279
    %281 = vmatprep.subr.mxu0 0.0
    %282 = vmatpush1.msra.mxu0 %v261
    %283 = vmatprep.subr.mxu0 0.0
    %284 = vmatpush1.msra.mxu0 %v262
    %285 = vmatprep.subr.mxu0 0.0
    %286 = vmatpush1.msra.mxu0 %v263
    %287 = vmatprep.subr.mxu0 0.0
    %288 = vmatpush1.msra.mxu0 %v264
    %289 = vmatprep.subr.mxu0 0.0
    %290 = vmatpush1.msra.mxu0 %v265
    %291 = vmatprep.subr.mxu0 0.0
    %292 = vmatpush1.msra.mxu0 %v266
    %293 = vmatprep.subr.mxu0 0.0
    %294 = vmatpush1.msra.mxu0 %v267
    %295 = vmatprep.subr.mxu0 0.0
    %296 = vmatpush1.msra.mxu0 %v268
    %297 = vmatprep.subr.mxu0 0.0
    %298 = vmatpush1.msra.mxu0 %v269
    %299 = vmatprep.subr.mxu0 0.0
    %300 = vmatpush1.msra.mxu0 %v270
    %301 = vmatprep.subr.mxu0 0.0
    %302 = vmatpush1.msra.mxu0 %v271
    %303 = vmatprep.subr.mxu0 0.0
    %304 = vmatpush1.msra.mxu0 %v272
    %305 = vmatprep.subr.mxu0 0.0
    %306 = vmatpush1.msra.mxu0 %v273
    %307 = vmatprep.subr.mxu0 0.0
    %308 = vmatpush1.msra.mxu0 %v274
    %309 = vmatprep.subr.mxu0 0.0
    %310 = vmatpush1.msra.mxu0 %v275
    %311 = vmatprep.subr.mxu0 0.0
    %312 = vmatpush1.msra.mxu0 %v276
    %313 = vmatprep.subr.mxu0 0.0
    %314 = vmatpush1.msra.mxu0 0.0
    %315 = vmatprep.subr.mxu0 0.0
    %316 = vmatpush1.msra.mxu0 0.0
    %317 = vmatprep.subr.mxu0 0.0
    %318 = vmatpush1.msra.mxu0 0.0
    %319 = vmatprep.subr.mxu0 0.0
    %320 = vmatpush1.msra.mxu0 0.0
    %321 = vmatprep.subr.mxu0 0.0
    %322 = vmatpush1.msra.mxu0 0.0
    %323 = vmatprep.subr.mxu0 0.0
    %324 = vmatpush1.msra.mxu0 0.0
    %325 = vmatprep.subr.mxu0 0.0
    %326 = vmatpush1.msra.mxu0 0.0
    %327 = vmatprep.subr.mxu0 0.0
    %328 = vmatpush1.msra.mxu0 0.0
    %329 = vmatprep.subr.mxu0 0.0
    %330 = vmatpush1.msra.mxu0 0.0
    %331 = vmatprep.subr.mxu0 0.0
    %332 = vmatpush1.msra.mxu0 0.0
    %333 = vmatprep.subr.mxu0 0.0
    %334 = vmatpush1.msra.mxu0 0.0
    %335 = vmatprep.subr.mxu0 0.0
    %336 = vmatpush1.msra.mxu0 0.0
    %337 = vmatprep.subr.mxu0 0.0
    %338 = vmatpush1.msra.mxu0 0.0
    %339 = vmatprep.subr.mxu0 0.0
    %340 = vmatpush1.msra.mxu0 0.0
    %341 = vmatprep.subr.mxu0 0.0
    %342 = vmatpush1.msra.mxu0 0.0
    %343 = vmatprep.subr.mxu0 0.0
    %344 = vmatpush1.msra.mxu0 0.0
    %345 = vmatprep.mubr.f32.mxu0 0.0
    %346 = vmatmul.mubr.f32.gmra.mrb[0].mxu0 %v260
    %v347 = vpop.f32.mrb[0].mxu0
    %v348 = vadd.f32 %v280, %v347
    %v349 = vpop.f32.mrb[0].mxu0
    %350 = vdwg.mxu0
    %v351 = vmax.f32 %v348, 0.0
    %352 = vst [vmem:[#allocation11] sm:$0xff] %v351
    // Predicated region
    $region42: #{encoder_forward.1} parent=1 // pred_check
      _
    $region43: #{encoder_forward.1} parent=1 // pred_check_branch
      %354 = sbr.rel (0) target = $region45
    $region44: #{encoder_forward.1} parent=1 // pred_region
      %s356 = ssub.s32 128, 128
      %357 = vsyncadd [#allocation4], %s356
      %s359 = sshll.u32 [#allocation11], 4
      %s360 = int_to_ptr.vmem [resolvable:$true] %s359
      %362 = dma.vmem_to_hbm [thread:$0]  %s360, 128, %s5, [#allocation4]
    $region45: #{encoder_forward.1} parent=1 // pred_fallthru
      _
    // Predicated region
    $region46: #{encoder_forward.1} parent=1 // pred_check
      _
    $region47: #{encoder_forward.1} parent=1 // pred_check_branch
      %364 = sbr.rel (0) target = $region49
    $region48: #{encoder_forward.1} parent=1 // pred_region
      %365 = dma.done [#allocation4], 128
    $region49: #{encoder_forward.1} parent=1 // pred_fallthru
      _
    %366 = vsyncpa [#allocation3], 1
    %367 = vsyncpa [#allocation6], 1
    %368 = vsyncpa [#allocation9], 1
    %369 = vsyncpa [#allocation4], 1

</llo_original>
